<compile_context>
chip_gen: v7x
topology: tpu7x:2x2x1
jax: 0.10.0
libtpu: 0.0.40
codegen_flags: <defaults>
</compile_context>

<pallas_src>
import functools

import jax
import jax.numpy as jnp
from jax import lax
from jax.experimental import pallas as pl
from jax.experimental.pallas import tpu as pltpu

_LANE = 128
_TARGET_BLOCK_BYTES = 4 << 20     # ~4 MiB f32 per pipelined block


def _vmem_capacity_bytes():
    try:
        cap = int(pltpu.get_tpu_info().vmem_capacity_bytes)
        if cap > 0:
            return cap
    except Exception:
        pass
    return 64 * 1024 * 1024       # conservative (v7x-sized) fallback


def _bn1d_phases_body(x_ref, g_ref, b_ref, o_ref, s0_ref, s1_ref, cache_ref, *,
                      inv_n, eps, fold_width, rows_total, tile_rows):
    """grid = (channel tiles, 2 phases, row tiles)."""
    phase = pl.program_id(1)
    r = pl.program_id(2)

    @pl.when(jnp.logical_and(phase == 0, r == 0))
    def _init():
        s0_ref[...] = jnp.zeros_like(s0_ref)
        s1_ref[...] = jnp.zeros_like(s1_ref)

    @pl.when(phase == 0)
    def _accumulate():
        xb = x_ref[...]
        if cache_ref is not None:
            cache_ref[r] = xb                            # stash tile (input dtype)
        xf = xb.astype(jnp.float32)
        if rows_total % tile_rows != 0:
            # Ragged last row tile: rows beyond the array hold garbage; zero
            # them so they do not perturb sum / sum-of-squares.
            valid = rows_total - r * tile_rows
            row_ids = lax.broadcasted_iota(jnp.int32, xf.shape, 0)
            xf = jnp.where(row_ids < valid, xf, 0.0)
        s0_ref[...] += jnp.sum(xf, axis=0, keepdims=True)
        s1_ref[...] += jnp.sum(xf * xf, axis=0, keepdims=True)

    @pl.when(jnp.logical_and(phase == 1, r == 0))
    def _finalize_stats():
        s = s0_ref[...]
        sq = s1_ref[...]
        if fold_width is not None:
            # Channel-fold layout: lane l holds channel (l % fold_width).
            # log2(fold) rotate-and-add steps replicate the per-channel totals
            # across every fold group (XLU rolls, essentially free).
            step = fold_width
            while step < s.shape[-1]:
                s = s + pltpu.roll(s, shift=step, axis=1)
                sq = sq + pltpu.roll(sq, shift=step, axis=1)
                step *= 2
        mean = s * inv_n
        # One-pass variance in f32, clamped to kill tiny negatives from
        # cancellation.  NOTE: loses precision when |mean| >> std (a shifted /
        # Welford accumulation would fix this at some extra cost).
        var = jnp.maximum(sq * inv_n - mean * mean, 0.0)
        scale = g_ref[...] * lax.rsqrt(var + eps)
        shift = b_ref[...] - mean * scale
        s0_ref[...] = scale                              # reuse scratch: scale
        s1_ref[...] = shift                              # reuse scratch: shift

    @pl.when(phase == 1)
    def _normalize():
        if cache_ref is not None:
            xb = cache_ref[r]                            # no HBM re-read
        else:
            xb = x_ref[...]
        y = xb.astype(jnp.float32) * s0_ref[...] + s1_ref[...]
        o_ref[...] = y.astype(o_ref.dtype)


def _bn1d_cached_kernel(x_ref, g_ref, b_ref, o_ref, s0_ref, s1_ref, cache_ref, **kw):
    _bn1d_phases_body(x_ref, g_ref, b_ref, o_ref, s0_ref, s1_ref, cache_ref, **kw)


def _bn1d_stream_kernel(x_ref, g_ref, b_ref, o_ref, s0_ref, s1_ref, **kw):
    _bn1d_phases_body(x_ref, g_ref, b_ref, o_ref, s0_ref, s1_ref, None, **kw)


def bn1d_forward(x, gamma, beta, *, use_bn=True, eps=1e-5,
                 _force_streaming=False, _max_rows_per_tile=None):
    """BN1d forward: x.view(-1, C) -> BatchNorm1d (training-mode batch stats) -> view back."""
    # TODO(synk): running_mean/running_var tracking and eval-mode normalization
    # (nn.BatchNorm1d buffers) are not implemented; training-mode batch stats only.
    if not use_bn:
        return x

    origin_shape = x.shape
    C = int(origin_shape[-1])
    x2 = x.reshape(-1, C)                                # == torch .view(-1, C)
    R = int(x2.shape[0])
    if R == 0:
        return x
    out_dtype = x.dtype
    in_elt = x2.dtype.itemsize
    out_elt = jnp.dtype(out_dtype).itemsize
    eps = float(eps)
    inv_n = 1.0 / float(R)

    gamma_k = gamma.astype(jnp.float32).reshape(1, C)
    beta_k = beta.astype(jnp.float32).reshape(1, C)

    # ---- channel layout ------------------------------------------------------
    # Tiny channel counts that divide 128: fold k = 128/C consecutive rows into
    # the lane axis, (R, C) -> (R/k, 128).  Contiguous reshape => no data
    # movement; stores become lane-dense without inflating HBM traffic.
    fold = 1
    if C < _LANE and _LANE % C == 0 and R % (_LANE // C) == 0:
        fold = _LANE // C
    R2, C2 = R // fold, C * fold
    if fold > 1:
        x2 = x2.reshape(R2, C2)
        gamma_k = jnp.tile(gamma_k, (1, fold))
        beta_k = jnp.tile(beta_k, (1, fold))

    # Channel tile: prefer >=2 tiles (megacore parallel axis on v7x) among
    # {512, 256, 128}; ragged channel counts use one full-C block (masked tail
    # stores are far cheaper than padding x in HBM).
    if C2 % _LANE == 0:
        tc = _LANE
        for cand in (512, 256):
            if C2 % cand == 0 and C2 // cand >= 2:
                tc = cand
                break
    else:
        tc = C2
    n_c = C2 // tc
    # TODO(synk): for single-channel-tile inputs on v7x, rows could be split
    # across the two TensorCores with per-core partial sums combined afterwards.

    # ---- row tile: ~4 MiB f32 blocks so the ~0.35us per-grid-step overhead is
    # amortized even against v7x's ~3.2 TB/s HBM -------------------------------
    tr = (_TARGET_BLOCK_BYTES // (tc * 4)) // 8 * 8
    tr = max(256, min(4096, tr))
    if _max_rows_per_tile is not None:
        tr = min(tr, max(8, (_max_rows_per_tile // 8) * 8))
    if R2 <= tr:
        tr = R2                                          # full-extent row block (always legal)

    # ---- generation-aware VMEM budget & strategy -----------------------------
    cap = _vmem_capacity_bytes()                         # 128 MiB v5e/v6e, 64 MiB v7x
    vmem_budget = int(cap * 0.60)
    vmem_limit = int(cap * 0.80)

    def pipe_bytes(rows):
        # 3-deep input + 2-deep output pipeline buffers + f32 temporaries headroom.
        return rows * tc * (3 * in_elt + 2 * out_elt + 3 * 4)

    nr = -(-R2 // tr)
    cache_bytes = nr * tr * tc * in_elt
    use_cache = (not _force_streaming) and (cache_bytes + pipe_bytes(tr) <= vmem_budget)
    if not use_cache:
        # Streaming path: just make sure the pipeline buffers themselves fit.
        while pipe_bytes(tr) > vmem_budget and tr > 256:
            tr = max(256, ((tr // 2) // 8) * 8)
        nr = -(-R2 // tr)

    grid = (n_c, 2, nr)

    if use_cache:
        # During phase 1 the input block index stays pinned at the last phase-0
        # block, so x is never re-read from HBM (1 read + 1 write total).
        x_index = lambda c, p, r, _nr=nr: (r * (1 - p) + (_nr - 1) * p, c)
    else:
        x_index = lambda c, p, r: (r, c)
    g_index = lambda c, p, r: (0, c)
    # Output block index is pinned to (0, c) during phase 0 (nothing is written
    # then) and only advances with r during phase 1, after each block has been
    # fully written.  This relies on Pallas writing an output block back only
    # when its block index changes (standard accumulator-style usage).
    o_index = lambda c, p, r: (r * p, c)

    scratch = [pltpu.VMEM((1, tc), jnp.float32),         # per-lane sum   -> scale
               pltpu.VMEM((1, tc), jnp.float32)]         # per-lane sumsq -> shift
    if use_cache:
        scratch.append(pltpu.VMEM((nr, tr, tc), x2.dtype))

    kern = functools.partial(
        _bn1d_cached_kernel if use_cache else _bn1d_stream_kernel,
        inv_n=inv_n, eps=eps,
        fold_width=(C if fold > 1 else None),
        rows_total=R2, tile_rows=tr)

    def _call(buffered):
        if buffered:
            # 3-deep input buffering hides the DMA bubble at phase / tile edges.
            x_spec = pl.BlockSpec((tr, tc), x_index, pipeline_mode=pl.Buffered(3))
        else:
            x_spec = pl.BlockSpec((tr, tc), x_index)
        return pl.pallas_call(
            kern,
            out_shape=jax.ShapeDtypeStruct((R2, C2), out_dtype),
            grid_spec=pltpu.PrefetchScalarGridSpec(
                num_scalar_prefetch=0,
                grid=grid,
                in_specs=[x_spec,
                          pl.BlockSpec((1, tc), g_index),
                          pl.BlockSpec((1, tc), g_index)],
                out_specs=pl.BlockSpec((tr, tc), o_index),
                scratch_shapes=scratch),
            compiler_params=pltpu.CompilerParams(
                dimension_semantics=("parallel", "arbitrary", "arbitrary"),
                vmem_limit_bytes=vmem_limit),
        )(x2, gamma_k, beta_k)

    try:
        out = _call(True)
    except Exception:
        # Fallback for jax versions without BlockSpec(pipeline_mode=...).
        out = _call(False)

    return out.reshape(origin_shape)


def _reference_bn1d(x, gamma, beta, eps=1e-5):
    """Pure-JAX reference mirroring nn.BatchNorm1d (training mode, biased var)."""
    origin_shape = x.shape
    C = origin_shape[-1]
    x2 = x.reshape(-1, C).astype(jnp.float32)
    mean = jnp.mean(x2, axis=0, keepdims=True)
    var = jnp.mean((x2 - mean) ** 2, axis=0, keepdims=True)
    y = (x2 - mean) / jnp.sqrt(var + eps) * gamma.reshape(1, C) + beta.reshape(1, C)
    return y.reshape(origin_shape).astype(x.dtype)


if __name__ == "__main__":
    key = jax.random.PRNGKey(0)
    ks = jax.random.split(key, 8)

    def check(x, gamma, beta, **kw):
        y = jax.block_until_ready(bn1d_forward(x, gamma, beta, use_bn=True, **kw))
        assert y.shape == x.shape and y.dtype == x.dtype
        ref = _reference_bn1d(x, gamma, beta)
        err = jnp.max(jnp.abs(y.astype(jnp.float32) - ref.astype(jnp.float32)))
        assert err < 5e-4, err

    # 1) Small GCN-style input (batch, nodes, out_dim=32): channel-fold path,
    #    whole strip cached in VMEM.  BatchNorm1d default params (w=1, b=0).
    C = 32
    g1 = jnp.ones((C,), jnp.float32)
    b1 = jnp.zeros((C,), jnp.float32)
    x1 = jax.random.normal(ks[0], (2, 8, C), dtype=jnp.float32)
    check(x1, g1, b1)

    # use_bn=False passthrough.
    assert bool(jnp.all(bn1d_forward(x1, g1, b1, use_bn=False) == x1))

    # 2) Larger row count, still VMEM-cached (single row tile).
    x_big = jax.random.normal(ks[1], (64, 256, C), dtype=jnp.float32)
    check(x_big, g1, b1)

    # 3) Cached path with multiple row tiles and a masked (ragged) tail tile.
    check(x_big, g1, b1, _max_rows_per_tile=1000)

    # 4) Streaming (re-read) path with a masked tail tile.
    check(x_big, g1, b1, _force_streaming=True, _max_rows_per_tile=1000)

    # 5) Ragged channel count (C not a multiple of 128): single full-C block.
    C5 = 160
    g5 = 1.0 + 0.5 * jax.random.normal(ks[2], (C5,), dtype=jnp.float32)
    b5 = jax.random.normal(ks[3], (C5,), dtype=jnp.float32)
    x5 = jax.random.normal(ks[4], (4, 24, C5), dtype=jnp.float32)
    check(x5, g5, b5)

    # 6) Two channel tiles (C=256 -> tc=128): parallel channel axis (megacore on v7x).
    C6 = 256
    g6 = 1.0 + 0.5 * jax.random.normal(ks[5], (C6,), dtype=jnp.float32)
    b6 = jax.random.normal(ks[6], (C6,), dtype=jnp.float32)
    x6 = jax.random.normal(ks[7], (8, 16, C6), dtype=jnp.float32)
    check(x6, g6, b6)

    print("KERNEL_OK")
</pallas_src>

<mosaic_0001>
module attributes {stable_mosaic.version = 11 : i64} {
  func.func @_bn1d_cached_kernel(%arg0: i32, %arg1: i32, %arg2: i32, %arg3: memref<4x128xf32, #tpu.memory_space<vmem>>, %arg4: memref<1x128xf32, #tpu.memory_space<vmem>>, %arg5: memref<1x128xf32, #tpu.memory_space<vmem>>, %arg6: memref<4x128xf32, #tpu.memory_space<vmem>>, %arg7: memref<1x128xf32, #tpu.memory_space<vmem>>, %arg8: memref<1x128xf32, #tpu.memory_space<vmem>>, %arg9: memref<1x4x128xf32, #tpu.memory_space<vmem>>) attributes {dimension_semantics = [#tpu.dimension_semantics<parallel>, #tpu.dimension_semantics<arbitrary>, #tpu.dimension_semantics<arbitrary>], iteration_bounds = array<i64: 1, 2, 1>, scalar_prefetch = 0 : i64, scratch_operands = 3 : i64, tpu.core_type = #tpu.core_type<tc>, window_params = [{transform_indices = @transform_0, window_bounds = array<i64: 4, 128>}, {transform_indices = @transform_1, window_bounds = array<i64: 1, 128>}, {transform_indices = @transform_2, window_bounds = array<i64: 1, 128>}, {transform_indices = @transform_3, window_bounds = array<i64: 4, 128>}]} {
    %c0_i32 = arith.constant 0 : i32
    %0 = arith.cmpi eq, %arg1, %c0_i32 : i32
    %c0_i32_0 = arith.constant 0 : i32
    %1 = arith.cmpi eq, %arg2, %c0_i32_0 : i32
    %2 = arith.andi %0, %1 : i1
    %3 = arith.extui %2 : i1 to i32
    %c0_i32_1 = arith.constant 0 : i32
    %4 = arith.cmpi ne, %3, %c0_i32_1 : i32
    scf.if %4 {
      %cst = arith.constant 0.000000e+00 : f32
      %16 = vector.broadcast %cst : f32 to vector<1x128xf32>
      %c0 = arith.constant 0 : index
      %c0_8 = arith.constant 0 : index
      %17 = vector.load %arg7[%c0, %c0_8] : memref<1x128xf32, #tpu.memory_space<vmem>>, vector<1x128xf32>
      tpu.vector_store %arg7[%c0, %c0_8], %16 {strides = array<i32>} : memref<1x128xf32, #tpu.memory_space<vmem>>, vector<1x128xf32>,
      %cst_9 = arith.constant 0.000000e+00 : f32
      %18 = vector.broadcast %cst_9 : f32 to vector<1x128xf32>
      %c0_10 = arith.constant 0 : index
      %c0_11 = arith.constant 0 : index
      %19 = vector.load %arg8[%c0_10, %c0_11] : memref<1x128xf32, #tpu.memory_space<vmem>>, vector<1x128xf32>
      tpu.vector_store %arg8[%c0_10, %c0_11], %18 {strides = array<i32>} : memref<1x128xf32, #tpu.memory_space<vmem>>, vector<1x128xf32>,
    } else {
    }
    %c0_i32_2 = arith.constant 0 : i32
    %5 = arith.cmpi eq, %arg1, %c0_i32_2 : i32
    %6 = arith.extui %5 : i1 to i32
    %c0_i32_3 = arith.constant 0 : i32
    %7 = arith.cmpi ne, %6, %c0_i32_3 : i32
    scf.if %7 {
      %c0 = arith.constant 0 : index
      %c0_8 = arith.constant 0 : index
      %16 = vector.load %arg3[%c0, %c0_8] : memref<4x128xf32, #tpu.memory_space<vmem>>, vector<4x128xf32>
      %17 = arith.index_cast %arg2 : i32 to index
      %c0_9 = arith.constant 0 : index
      %c0_10 = arith.constant 0 : index
      %18 = vector.load %arg9[%17, %c0_9, %c0_10] : memref<1x4x128xf32, #tpu.memory_space<vmem>>, vector<1x4x128xf32>
      %19 = vector.shape_cast %18 : vector<1x4x128xf32> to vector<4x128xf32>
      %20 = vector.shape_cast %16 : vector<4x128xf32> to vector<1x4x128xf32>
      tpu.vector_store %arg9[%17, %c0_9, %c0_10], %20 {strides = array<i32>} : memref<1x4x128xf32, #tpu.memory_space<vmem>>, vector<1x4x128xf32>,
      %c0_11 = arith.constant 0 : index
      %c0_12 = arith.constant 0 : index
      %21 = vector.load %arg7[%c0_11, %c0_12] : memref<1x128xf32, #tpu.memory_space<vmem>>, vector<1x128xf32>
      %cst = arith.constant dense<0.000000e+00> : vector<128xf32>
      %22 = vector.multi_reduction <add>, %16, %cst [0] : vector<4x128xf32> to vector<128xf32>
      %23 = vector.shape_cast %22 : vector<128xf32> to vector<1x128xf32>
      %24 = arith.addf %21, %23 : vector<1x128xf32>
      %c0_13 = arith.constant 0 : index
      %c0_14 = arith.constant 0 : index
      %25 = vector.load %arg7[%c0_13, %c0_14] : memref<1x128xf32, #tpu.memory_space<vmem>>, vector<1x128xf32>
      tpu.vector_store %arg7[%c0_13, %c0_14], %24 {strides = array<i32>} : memref<1x128xf32, #tpu.memory_space<vmem>>, vector<1x128xf32>,
      %c0_15 = arith.constant 0 : index
      %c0_16 = arith.constant 0 : index
      %26 = vector.load %arg8[%c0_15, %c0_16] : memref<1x128xf32, #tpu.memory_space<vmem>>, vector<1x128xf32>
      %27 = arith.mulf %16, %16 : vector<4x128xf32>
      %cst_17 = arith.constant dense<0.000000e+00> : vector<128xf32>
      %28 = vector.multi_reduction <add>, %27, %cst_17 [0] : vector<4x128xf32> to vector<128xf32>
      %29 = vector.shape_cast %28 : vector<128xf32> to vector<1x128xf32>
      %30 = arith.addf %26, %29 : vector<1x128xf32>
      %c0_18 = arith.constant 0 : index
      %c0_19 = arith.constant 0 : index
      %31 = vector.load %arg8[%c0_18, %c0_19] : memref<1x128xf32, #tpu.memory_space<vmem>>, vector<1x128xf32>
      tpu.vector_store %arg8[%c0_18, %c0_19], %30 {strides = array<i32>} : memref<1x128xf32, #tpu.memory_space<vmem>>, vector<1x128xf32>,
    } else {
    }
    %c1_i32 = arith.constant 1 : i32
    %8 = arith.cmpi eq, %arg1, %c1_i32 : i32
    %c0_i32_4 = arith.constant 0 : i32
    %9 = arith.cmpi eq, %arg2, %c0_i32_4 : i32
    %10 = arith.andi %8, %9 : i1
    %11 = arith.extui %10 : i1 to i32
    %c0_i32_5 = arith.constant 0 : i32
    %12 = arith.cmpi ne, %11, %c0_i32_5 : i32
    scf.if %12 {
      %c0 = arith.constant 0 : index
      %c0_8 = arith.constant 0 : index
      %16 = vector.load %arg7[%c0, %c0_8] : memref<1x128xf32, #tpu.memory_space<vmem>>, vector<1x128xf32>
      %c0_9 = arith.constant 0 : index
      %c0_10 = arith.constant 0 : index
      %17 = vector.load %arg8[%c0_9, %c0_10] : memref<1x128xf32, #tpu.memory_space<vmem>>, vector<1x128xf32>
      %c32_i32 = arith.constant 32 : i32
      %18 = tpu.dynamic_rotate %16 by %c32_i32 dim 1 : vector<1x128xf32>, i32 -> vector<1x128xf32>
      %19 = arith.addf %16, %18 : vector<1x128xf32>
      %c32_i32_11 = arith.constant 32 : i32
      %20 = tpu.dynamic_rotate %17 by %c32_i32_11 dim 1 : vector<1x128xf32>, i32 -> vector<1x128xf32>
      %21 = arith.addf %17, %20 : vector<1x128xf32>
      %c64_i32 = arith.constant 64 : i32
      %22 = tpu.dynamic_rotate %19 by %c64_i32 dim 1 : vector<1x128xf32>, i32 -> vector<1x128xf32>
      %23 = arith.addf %19, %22 : vector<1x128xf32>
      %c64_i32_12 = arith.constant 64 : i32
      %24 = tpu.dynamic_rotate %21 by %c64_i32_12 dim 1 : vector<1x128xf32>, i32 -> vector<1x128xf32>
      %25 = arith.addf %21, %24 : vector<1x128xf32>
      %cst = arith.constant 6.250000e-02 : f32
      %26 = vector.broadcast %cst : f32 to vector<1x128xf32>
      %27 = arith.mulf %23, %26 : vector<1x128xf32>
      %cst_13 = arith.constant 6.250000e-02 : f32
      %28 = vector.broadcast %cst_13 : f32 to vector<1x128xf32>
      %29 = arith.mulf %25, %28 : vector<1x128xf32>
      %30 = arith.mulf %27, %27 : vector<1x128xf32>
      %31 = arith.subf %29, %30 : vector<1x128xf32>
      %cst_14 = arith.constant 0.000000e+00 : f32
      %32 = vector.broadcast %cst_14 : f32 to vector<1x128xf32>
      %33 = arith.maximumf %31, %32 : vector<1x128xf32>
      %c0_15 = arith.constant 0 : index
      %c0_16 = arith.constant 0 : index
      %34 = vector.load %arg4[%c0_15, %c0_16] : memref<1x128xf32, #tpu.memory_space<vmem>>, vector<1x128xf32>
      %cst_17 = arith.constant 9.99999974E-6 : f32
      %35 = vector.broadcast %cst_17 : f32 to vector<1x128xf32>
      %36 = arith.addf %33, %35 : vector<1x128xf32>
      %37 = math.rsqrt %36 : vector<1x128xf32>
      %38 = arith.mulf %34, %37 : vector<1x128xf32>
      %c0_18 = arith.constant 0 : index
      %c0_19 = arith.constant 0 : index
      %39 = vector.load %arg5[%c0_18, %c0_19] : memref<1x128xf32, #tpu.memory_space<vmem>>, vector<1x128xf32>
      %40 = arith.mulf %27, %38 : vector<1x128xf32>
      %41 = arith.subf %39, %40 : vector<1x128xf32>
      %c0_20 = arith.constant 0 : index
      %c0_21 = arith.constant 0 : index
      %42 = vector.load %arg7[%c0_20, %c0_21] : memref<1x128xf32, #tpu.memory_space<vmem>>, vector<1x128xf32>
      tpu.vector_store %arg7[%c0_20, %c0_21], %38 {strides = array<i32>} : memref<1x128xf32, #tpu.memory_space<vmem>>, vector<1x128xf32>,
      %c0_22 = arith.constant 0 : index
      %c0_23 = arith.constant 0 : index
      %43 = vector.load %arg8[%c0_22, %c0_23] : memref<1x128xf32, #tpu.memory_space<vmem>>, vector<1x128xf32>
      tpu.vector_store %arg8[%c0_22, %c0_23], %41 {strides = array<i32>} : memref<1x128xf32, #tpu.memory_space<vmem>>, vector<1x128xf32>,
    } else {
    }
    %c1_i32_6 = arith.constant 1 : i32
    %13 = arith.cmpi eq, %arg1, %c1_i32_6 : i32
    %14 = arith.extui %13 : i1 to i32
    %c0_i32_7 = arith.constant 0 : i32
    %15 = arith.cmpi ne, %14, %c0_i32_7 : i32
    scf.if %15 {
      %16 = arith.index_cast %arg2 : i32 to index
      %c0 = arith.constant 0 : index
      %c0_8 = arith.constant 0 : index
      %17 = vector.load %arg9[%16, %c0, %c0_8] : memref<1x4x128xf32, #tpu.memory_space<vmem>>, vector<1x4x128xf32>
      %18 = vector.shape_cast %17 : vector<1x4x128xf32> to vector<4x128xf32>
      %c0_9 = arith.constant 0 : index
      %c0_10 = arith.constant 0 : index
      %19 = vector.load %arg7[%c0_9, %c0_10] : memref<1x128xf32, #tpu.memory_space<vmem>>, vector<1x128xf32>
      %20 = vector.broadcast %19 : vector<1x128xf32> to vector<4x128xf32>
      %21 = arith.mulf %18, %20 : vector<4x128xf32>
      %c0_11 = arith.constant 0 : index
      %c0_12 = arith.constant 0 : index
      %22 = vector.load %arg8[%c0_11, %c0_12] : memref<1x128xf32, #tpu.memory_space<vmem>>, vector<1x128xf32>
      %23 = vector.broadcast %22 : vector<1x128xf32> to vector<4x128xf32>
      %24 = arith.addf %21, %23 : vector<4x128xf32>
      %c0_13 = arith.constant 0 : index
      %c0_14 = arith.constant 0 : index
      %25 = vector.load %arg6[%c0_13, %c0_14] : memref<4x128xf32, #tpu.memory_space<vmem>>, vector<4x128xf32>
      tpu.vector_store %arg6[%c0_13, %c0_14], %24 {strides = array<i32>} : memref<4x128xf32, #tpu.memory_space<vmem>>, vector<4x128xf32>,
    } else {
    }
    return
  }
  func.func @transform_0(%arg0: i32, %arg1: i32, %arg2: i32) -> (i32, i32) {
    %c1_i32 = arith.constant 1 : i32
    %0 = arith.subi %c1_i32, %arg1 : i32
    %1 = arith.muli %arg2, %0 : i32
    %c0_i32 = arith.constant 0 : i32
    %2 = arith.muli %c0_i32, %arg1 : i32
    %3 = arith.addi %1, %2 : i32
    %c0_i32_0 = arith.constant 0 : i32
    return %3, %arg0 : i32, i32
  }
  func.func @transform_1(%arg0: i32, %arg1: i32, %arg2: i32) -> (i32, i32) {
    %c0_i32 = arith.constant 0 : i32
    %c0_i32_0 = arith.constant 0 : i32
    return %c0_i32, %arg0 : i32, i32
  }
  func.func @transform_2(%arg0: i32, %arg1: i32, %arg2: i32) -> (i32, i32) {
    %c0_i32 = arith.constant 0 : i32
    %c0_i32_0 = arith.constant 0 : i32
    return %c0_i32, %arg0 : i32, i32
  }
  func.func @transform_3(%arg0: i32, %arg1: i32, %arg2: i32) -> (i32, i32) {
    %0 = arith.muli %arg2, %arg1 : i32
    %c0_i32 = arith.constant 0 : i32
    return %0, %arg0 : i32, i32
  }
}

</mosaic_0001>

<llo_original>
// kernel: tpu_custom_call.1
$region0: #{tpu_custom_call.1}
  #allocation0 [shape = 'u32[]', space=smem, size = 0x4, offset = 0x4, fixed_abs, tag = 'smem constant byte address 0x4 - core index']
  #allocation1 [shape = 'u32[144,128]{1,0:T(1,128)}', space=vmem, size = 0x12000, scoped, tag = 'internal scratch']
  #allocation2 [shape = 'f32[1,128]{1,0:T(1,128)}', space=vmem, size = 0x200, scoped, tag = 'scratch operand']
  #allocation3 [shape = 'f32[1,128]{1,0:T(1,128)}', space=vmem, size = 0x200, scoped, tag = 'scratch operand']
  #allocation4 [shape = 'f32[1,4,128]{2,1,0:T(4,128)}', space=vmem, size = 0x800, scoped, tag = 'scratch operand']
  %s0 = inlined_call_operand.hbm [shape: f32[4,128], index: 0, kind: input, shape index: {}]
  %s1 = inlined_call_operand.vmem [shape: f32[1,128], index: 1, kind: input, shape index: {}]
  %s2 = inlined_call_operand.vmem [shape: f32[1,128], index: 2, kind: input, shape index: {}]
  %s3 = inlined_call_operand.hbm [shape: f32[4,128], index: 3, kind: output, shape index: {}]
  %s4 = sld [smem:[#allocation0]]
  $region65: #{tpu_custom_call.1} parent=0
    _
  %s6 = ssub.s32 1, %s4
  %s7 = scalar_select 0, %s6, %s4
  $region1: #{tpu_custom_call.1} parent=0
    #allocation5 [shape = 'u8[4096]{0}', space=vmem, size = 0x1000, scoped, tag = 'input window, operand 0']
    #allocation6 [shape = 's32[2]{0}', space=sflag, size = 0x8, scoped, tag = 'scoped memory for tpu_custom_call.1']
    #allocation7 [shape = 's32[2]{0}', space=sflag, size = 0x8, scoped, tag = 'scoped memory for tpu_custom_call.1']
    #allocation8 [shape = 'u8[4096]{0}', space=vmem, size = 0x1000, scoped, tag = 'output window, operand 0']
    %8 = vsyncpa [#allocation6], 0
    %s9 = scalar_lea.sflag [#allocation6], 1
    %10 = vsyncpa %s9, 0
    %11 = vsyncpa [#allocation7], 0
    %s12 = scalar_lea.sflag [#allocation7], 1
    %13 = vsyncpa %s12, 0
    loop: start=0, step=1, limit=4
    $region2: #{tpu_custom_call.1} parent=1 // loop_pre_header
      _
    $region3: #{tpu_custom_call.1} parent=1 // loop_header
      %s15 = sphi 0, %s19
      %p16 = scmp.ge.s32.totalorder %s15, 4
      %s22 = sphi 0, %s41
      %s23 = sphi 0, %s37
      %s24 = sphi 0, %s33
      %s25 = sphi 0, %s22
      %s26 = sphi 0, %s23
      %s27 = sphi 0, %s24
      %s28 = sphi 0, %s25
      %s29 = sphi 0, %s26
      %s30 = sphi 0, %s27
      %s50 = sphi 0, %s52
      %s53 = sphi 0, %s50
      %s54 = sphi 0, %s53
      %s70 = sphi 0, %s54
      %s76 = sphi 0, %s78
      %s79 = sphi 0, %s76
      %s80 = sphi 0, %s79
      %s96 = sphi 0, %s80
      %s102 = sphi 0, %s104
      %s105 = sphi 0, %s102
      %s106 = sphi 0, %s105
      %s122 = sphi 0, %s106
      %s132 = sphi 0, %s134
      %s135 = sphi 0, %s132
      %s136 = sphi 0, %s135
      %s152 = sphi 0, %s136
    $region4: #{tpu_custom_call.1} parent=1 // loop_header_branch
      %18 = sbr.rel (%p16) target = $region8
    $region5: #{tpu_custom_call.1} parent=1 // loop_body
      %s20 = ssub.s32 %s15, 1
      %s21 = ssub.s32 %s15, 2
      %s31 = sadd.s32 1, %s24
      %p32 = scmp.ge.s32.totalorder %s31, 1
      %s33 = scalar_select %p32, 0, %s31
      %s34 = sadd.s32 1, %s23
      %s35 = scalar_select %p32, %s34, %s23
      %p36 = scmp.ge.s32.totalorder %s35, 2
      %s37 = scalar_select %p36, 0, %s35
      %s38 = sadd.s32 1, %s22
      %s39 = scalar_select %p36, %s38, %s22
      %p40 = scmp.ge.s32.totalorder %s39, 1
      %s41 = scalar_select %p40, 0, %s39
      %s42 = ssub.s32 1, %s23
      %s43 = smul.u32 %s24, %s42
      %s44 = ssub.s32 1, %s37
      %s45 = smul.u32 %s33, %s44
      %s46 = ssub.s32 %s43, %s45
      %s47 = ssub.s32 %s22, %s41
      %s48 = sor.u32 %s46, %s47
      %p49 = scmp.eq.s32.totalorder %s48, 0
      %s51 = sadd.s32 %s50, 1
      %s52 = scalar_select %p49, %s50, %s51
      %p55 = pneg %p49
      %p56 = scmp.eq.s32.totalorder %s15, 1
      %p57 = por %p55, %p56
      %p58 = scmp.ne.s32.totalorder %s50, %s53
      %p59 = scmp.eq.s32.totalorder %s15, 0
      %p60 = por %p58, %p59
      %p61 = scmp.ne.s32.totalorder %s50, %s53
      %p62 = scmp.eq.s32.totalorder %s20, 1
      %p63 = por %p61, %p62
      %p64 = scmp.ne.s32.totalorder %s53, %s54
      %p65 = scmp.eq.s32.totalorder %s20, 0
      %p66 = por %p64, %p65
      %p67 = scmp.ne.s32.totalorder %s53, %s54
      %p68 = scmp.eq.s32.totalorder %s21, 1
      %p69 = por %p67, %p68
      %p71 = scmp.ne.s32.totalorder %s54, %s70
      %p72 = scmp.eq.s32.totalorder %s21, 0
      %p73 = por %p71, %p72
      %s74 = ssub.s32 %s22, %s41
      %p75 = scmp.eq.s32.totalorder %s74, 0
      %s77 = sadd.s32 %s76, 1
      %s78 = scalar_select %p75, %s76, %s77
      %p81 = pneg %p75
      %p82 = scmp.eq.s32.totalorder %s15, 1
      %p83 = por %p81, %p82
      %p84 = scmp.ne.s32.totalorder %s76, %s79
      %p85 = scmp.eq.s32.totalorder %s15, 0
      %p86 = por %p84, %p85
      %p87 = scmp.ne.s32.totalorder %s76, %s79
      %p88 = scmp.eq.s32.totalorder %s20, 1
      %p89 = por %p87, %p88
      %p90 = scmp.ne.s32.totalorder %s79, %s80
      %p91 = scmp.eq.s32.totalorder %s20, 0
      %p92 = por %p90, %p91
      %p93 = scmp.ne.s32.totalorder %s79, %s80
      %p94 = scmp.eq.s32.totalorder %s21, 1
      %p95 = por %p93, %p94
      %p97 = scmp.ne.s32.totalorder %s80, %s96
      %p98 = scmp.eq.s32.totalorder %s21, 0
      %p99 = por %p97, %p98
      %s100 = ssub.s32 %s22, %s41
      %p101 = scmp.eq.s32.totalorder %s100, 0
      %s103 = sadd.s32 %s102, 1
      %s104 = scalar_select %p101, %s102, %s103
      %p107 = pneg %p101
      %p108 = scmp.eq.s32.totalorder %s15, 1
      %p109 = por %p107, %p108
      %p110 = scmp.ne.s32.totalorder %s102, %s105
      %p111 = scmp.eq.s32.totalorder %s15, 0
      %p112 = por %p110, %p111
      %p113 = scmp.ne.s32.totalorder %s102, %s105
      %p114 = scmp.eq.s32.totalorder %s20, 1
      %p115 = por %p113, %p114
      %p116 = scmp.ne.s32.totalorder %s105, %s106
      %p117 = scmp.eq.s32.totalorder %s20, 0
      %p118 = por %p116, %p117
      %p119 = scmp.ne.s32.totalorder %s105, %s106
      %p120 = scmp.eq.s32.totalorder %s21, 1
      %p121 = por %p119, %p120
      %p123 = scmp.ne.s32.totalorder %s106, %s122
      %p124 = scmp.eq.s32.totalorder %s21, 0
      %p125 = por %p123, %p124
      %s126 = smul.u32 %s24, %s23
      %s127 = smul.u32 %s33, %s37
      %s128 = ssub.s32 %s126, %s127
      %s129 = ssub.s32 %s22, %s41
      %s130 = sor.u32 %s128, %s129
      %p131 = scmp.eq.s32.totalorder %s130, 0
      %s133 = sadd.s32 %s132, 1
      %s134 = scalar_select %p131, %s132, %s133
      %p137 = pneg %p131
      %p138 = scmp.eq.s32.totalorder %s15, 1
      %p139 = por %p137, %p138
      %p140 = scmp.ne.s32.totalorder %s132, %s135
      %p141 = scmp.eq.s32.totalorder %s15, 0
      %p142 = por %p140, %p141
      %p143 = scmp.ne.s32.totalorder %s132, %s135
      %p144 = scmp.eq.s32.totalorder %s20, 1
      %p145 = por %p143, %p144
      %p146 = scmp.ne.s32.totalorder %s135, %s136
      %p147 = scmp.eq.s32.totalorder %s20, 0
      %p148 = por %p146, %p147
      %p149 = scmp.ne.s32.totalorder %s135, %s136
      %p150 = scmp.eq.s32.totalorder %s21, 1
      %p151 = por %p149, %p150
      %p153 = scmp.ne.s32.totalorder %s136, %s152
      %p154 = scmp.eq.s32.totalorder %s21, 0
      %p155 = por %p153, %p154
      %p156 = scmp.le.s32.totalorder 1, %s15
      %p157 = scmp.lt.s32.totalorder %s15, 3
      %p158 = pnand %p156, %p157
      %p159 = pneg %p158
      // Predicated region
      $region9: #{tpu_custom_call.1} parent=5 // pred_check
        _
      $region10: #{tpu_custom_call.1} parent=5 // pred_check_branch
        %161 = sbr.rel (%p158) target = $region12
      $region11: #{tpu_custom_call.1} parent=5 // pred_region
        %s162 = ssub.s32 %s15, 1
        // Predicated region
        $region13: #{tpu_custom_call.1} parent=11 // pred_check
          %p163 = pneg %p92
        $region14: #{tpu_custom_call.1} parent=11 // pred_check_branch
          %165 = sbr.rel (%p163) target = $region16
        $region15: #{tpu_custom_call.1} parent=11 // pred_region
          %p166 = scmp.lt.s32.totalorder %s25, 0
          %s167 = scalar_select %p166, %s25, 0
          %s168 = scalar_lea.vmem %s1, %s167
        $region16: #{tpu_custom_call.1} parent=11 // pred_fallthru
          _
        // Predicated region
        $region17: #{tpu_custom_call.1} parent=11 // pred_check
          %p169 = pneg %p118
        $region18: #{tpu_custom_call.1} parent=11 // pred_check_branch
          %171 = sbr.rel (%p169) target = $region20
        $region19: #{tpu_custom_call.1} parent=11 // pred_region
          %p172 = scmp.lt.s32.totalorder %s25, 0
          %s173 = scalar_select %p172, %s25, 0
          %s174 = scalar_lea.vmem %s2, %s173
        $region20: #{tpu_custom_call.1} parent=11 // pred_fallthru
          _
      $region12: #{tpu_custom_call.1} parent=5 // pred_fallthru
        _
      %p175 = scmp.lt.s32.totalorder %s15, 2
      // Predicated region
      $region21: #{tpu_custom_call.1} parent=5 // pred_check
        %p176 = pneg %p175
      $region22: #{tpu_custom_call.1} parent=5 // pred_check_branch
        %178 = sbr.rel (%p176) target = $region24
      $region23: #{tpu_custom_call.1} parent=5 // pred_region
        // Predicated region
        $region25: #{tpu_custom_call.1} parent=23 // pred_check
          %p179 = pneg %p60
        $region26: #{tpu_custom_call.1} parent=23 // pred_check_branch
          %181 = sbr.rel (%p179) target = $region28
        $region27: #{tpu_custom_call.1} parent=23 // pred_region
          %s182 = sand.u32 %s50, 1
          %s183 = scalar_lea.sflag [#allocation6], %s182
          %s184 = sand.u32 %s50, 1
          %s185 = smul.addr %s184, 4
          %s186 = scalar_lea.vmem [#allocation5], %s185
          %s187 = ssub.s32 1, %s23
          %s188 = smul.u32 %s24, %s187
          %s190 = ssub.s32 64, 64
          %191 = vsyncadd %s183, %s190
          %s192 = sadd.s32 %s22, %s188
          %s193 = smul.addr %s192, 64
          %s194 = scalar_lea.hbm %s0, %s193
          %s196 = sshll.u32 %s186, 4
          %s197 = int_to_ptr.vmem [resolvable:$true] %s196
          %199 = dma.hbm_to_vmem [thread:$0]  %s194, 64, %s197, %s183
        $region28: #{tpu_custom_call.1} parent=23 // pred_fallthru
          _
      $region24: #{tpu_custom_call.1} parent=5 // pred_fallthru
        _
      %p200 = scmp.le.s32.totalorder 1, %s15
      %p201 = scmp.lt.s32.totalorder %s15, 3
      %p202 = pnand %p200, %p201
      %p203 = pneg %p202
      // Predicated region
      $region29: #{tpu_custom_call.1} parent=5 // pred_check
        _
      $region30: #{tpu_custom_call.1} parent=5 // pred_check_branch
        %205 = sbr.rel (%p202) target = $region32
      $region31: #{tpu_custom_call.1} parent=5 // pred_region
        %s206 = ssub.s32 %s15, 1
        %s207 = sand.u32 %s53, 1
        %s208 = scalar_lea.sflag [#allocation6], %s207
        %s209 = sand.u32 %s53, 1
        %s210 = smul.addr %s209, 4
        %s211 = scalar_lea.vmem [#allocation5], %s210
        // Predicated region
        $region33: #{tpu_custom_call.1} parent=31 // pred_check
          %p212 = pneg %p66
        $region34: #{tpu_custom_call.1} parent=31 // pred_check_branch
          %214 = sbr.rel (%p212) target = $region36
        $region35: #{tpu_custom_call.1} parent=31 // pred_region
          %215 = dma.done %s208, 64
        $region36: #{tpu_custom_call.1} parent=31 // pred_fallthru
          _
        %s216 = sand.u32 %s53, 1
        %s217 = scalar_lea.sflag [#allocation6], %s216
        %s218 = sand.u32 %s53, 1
        %s219 = smul.addr %s218, 4
        %s220 = scalar_lea.vmem [#allocation5], %s219
        %p221 = pneg %p66
        %p222 = pneg %p63
        %p223 = scmp.lt.s32.totalorder %s25, 0
        %s224 = scalar_select %p223, %s25, 0
        %s225 = scalar_lea.vmem %s1, %s224
        %p226 = pneg %p92
        %p227 = pneg %p89
        %p228 = scmp.lt.s32.totalorder %s25, 0
        %s229 = scalar_select %p228, %s25, 0
        %s230 = scalar_lea.vmem %s2, %s229
        %p231 = pneg %p118
        %p232 = pneg %p115
        %p233 = pneg %p148
        %p234 = pneg %p145
        %s235 = sand.u32 %s135, 1
        %s236 = scalar_lea.sflag [#allocation7], %s235
        %s237 = sand.u32 %s135, 1
        %s238 = smul.addr %s237, 4
        %s239 = scalar_lea.vmem [#allocation8], %s238
        %s240 = ssub.s32 1, %s26
        %s241 = smul.u32 %s27, %s240
        %p242 = scmp.lt.s32.totalorder %s25, 0
        %s243 = scalar_select %p242, %s25, 0
        %s244 = scalar_lea.vmem %s1, %s243
        %p245 = scmp.lt.s32.totalorder %s25, 0
        %s246 = scalar_select %p245, %s25, 0
        %s247 = scalar_lea.vmem %s2, %s246
        %s248 = smul.u32 %s27, %s26
        %p249 = scmp.eq.s32.totalorder %s26, 0
        %p250 = scmp.eq.s32.totalorder %s27, 0
        %p251 = pnand %p249, %p250
        %p252 = pneg %p251
        // Predicated region
        $region37: #{tpu_custom_call.1} parent=31 // pred_check
          _
        $region38: #{tpu_custom_call.1} parent=31 // pred_check_branch
          %254 = sbr.rel (%p251) target = $region40
        $region39: #{tpu_custom_call.1} parent=31 // pred_region
          %255 = vst [vmem:[#allocation2] sm:$0x1] 0.0
          %256 = vst [vmem:[#allocation3] sm:$0x1] 0.0
        $region40: #{tpu_custom_call.1} parent=31 // pred_fallthru
          _
        // Predicated region
        $region41: #{tpu_custom_call.1} parent=31 // pred_check
          %p257 = pneg %p249
        $region42: #{tpu_custom_call.1} parent=31 // pred_check_branch
          %259 = sbr.rel (%p257) target = $region44
        $region43: #{tpu_custom_call.1} parent=31 // pred_region
          %v260 = vld [vmem:[%s211] sm:$0xf]
          %s261 = smul.u32 %s27, 4
          %s262 = scalar_lea.vmem [#allocation4], %s261
          %263 = vst [vmem:[%s262] sm:$0xf] %v260
          %v264 = vld [vmem:[#allocation2] sm:$0x1]
          %vm265 = vcmask 1043456
          %v266 = vsel %vm265, %v260, 0.0
          %v267 = vrot.slane %v266, 4
          %v268 = vadd.f32 %v266, %v267
          %v269 = vrot.slane %v268, 2
          %v270 = vadd.f32 %v268, %v269
          %v271 = vrot.slane %v270, 1
          %v272 = vadd.f32 %v270, %v271
          %v273 = vadd.f32 %v264, %v272
          %274 = vst [vmem:[#allocation2] sm:$0x1] %v273
          %v275 = vld [vmem:[#allocation3] sm:$0x1]
          %v276 = vmul.f32 %v260, %v260
          %v277 = vsel %vm265, %v276, 0.0
          %v278 = vrot.slane %v277, 4
          %v279 = vadd.f32 %v277, %v278
          %v280 = vrot.slane %v279, 2
          %v281 = vadd.f32 %v279, %v280
          %v282 = vrot.slane %v281, 1
          %v283 = vadd.f32 %v281, %v282
          %v284 = vadd.f32 %v275, %v283
          %285 = vst [vmem:[#allocation3] sm:$0x1] %v284
        $region44: #{tpu_custom_call.1} parent=31 // pred_fallthru
          _
        %p286 = scmp.eq.s32.totalorder %s26, 1
        %p287 = pnand %p286, %p250
        %p288 = pneg %p287
        // Predicated region
        $region45: #{tpu_custom_call.1} parent=31 // pred_check
          _
        $region46: #{tpu_custom_call.1} parent=31 // pred_check_branch
          %290 = sbr.rel (%p287) target = $region48
        $region47: #{tpu_custom_call.1} parent=31 // pred_region
          %v291 = vld [vmem:[#allocation2] sm:$0x1]
          %v292 = vld [vmem:[#allocation3] sm:$0x1]
          %293 = vrot.lane.b32.xlu0 %v291, 32
          %v294 = vpop.permute.xlu0 %293
          %v295 = vadd.f32 %v291, %v294
          %296 = vrot.lane.b32.xlu0 %v292, 32
          %v297 = vpop.permute.xlu0 %296
          %v298 = vadd.f32 %v292, %v297
          %299 = vrot.lane.b32.xlu0 %v295, 64
          %v300 = vpop.permute.xlu0 %299
          %v301 = vadd.f32 %v295, %v300
          %302 = vrot.lane.b32.xlu0 %v298, 64
          %v303 = vpop.permute.xlu0 %302
          %v304 = vadd.f32 %v298, %v303
          %v305 = vmul.f32 %v301, 0.0625
          %v306 = vmul.f32 %v304, 0.0625
          %v307 = vmul.f32 %v305, %v305
          %v308 = vsub.f32 %v306, %v307
          %v309 = vmax.f32 %v308, 0.0
          %v310 = vld [vmem:[%s244] sm:$0x1]
          %v311 = vadd.f32 %v309, 1e-05
          %v312 = vrsqrt.pop %v311
          %v313 = vmul.f32 %v310, %v312
          %v314 = vld [vmem:[%s247] sm:$0x1]
          %v315 = vmul.f32 %v305, %v313
          %v316 = vsub.f32 %v314, %v315
          %317 = vst [vmem:[#allocation2] sm:$0x1] %v313
          %318 = vst [vmem:[#allocation3] sm:$0x1] %v316
        $region48: #{tpu_custom_call.1} parent=31 // pred_fallthru
          _
        // Predicated region
        $region49: #{tpu_custom_call.1} parent=31 // pred_check
          %p319 = pneg %p286
        $region50: #{tpu_custom_call.1} parent=31 // pred_check_branch
          %321 = sbr.rel (%p319) target = $region52
        $region51: #{tpu_custom_call.1} parent=31 // pred_region
          %s322 = smul.u32 %s27, 4
          %s323 = scalar_lea.vmem [#allocation4], %s322
          %v324 = vld [vmem:[%s323] sm:$0xf]
          %v325 = vld [vmem:[#allocation2] sm:$0x1]
          %v327 = vlaneseq
          %v328 = vshrl.u32 %v327, 7
          %v329 = vsub.s32 0, %v328
          %v330 = vrot.slane %v325, %v329
          %v332 = vmul.f32 %v324, %v330
          %v333 = vld [vmem:[#allocation3] sm:$0x1]
          %v335 = vlaneseq
          %v336 = vshrl.u32 %v335, 7
          %v337 = vsub.s32 0, %v336
          %v338 = vrot.slane %v333, %v337
          %v340 = vadd.f32 %v332, %v338
          %341 = vst [vmem:[%s239] sm:$0xf] %v340
        $region52: #{tpu_custom_call.1} parent=31 // pred_fallthru
          _
        %s342 = sand.u32 %s135, 1
        %s343 = scalar_lea.sflag [#allocation7], %s342
        %s344 = sand.u32 %s135, 1
        %s345 = smul.addr %s344, 4
        %s346 = scalar_lea.vmem [#allocation8], %s345
        // Predicated region
        $region53: #{tpu_custom_call.1} parent=31 // pred_check
          %p347 = pneg %p145
        $region54: #{tpu_custom_call.1} parent=31 // pred_check_branch
          %349 = sbr.rel (%p347) target = $region56
        $region55: #{tpu_custom_call.1} parent=31 // pred_region
          %s350 = smul.u32 %s27, %s26
          %s352 = ssub.s32 64, 64
          %353 = vsyncadd %s343, %s352
          %s354 = sadd.s32 %s25, %s350
          %s355 = smul.addr %s354, 64
          %s356 = scalar_lea.hbm %s3, %s355
          %s358 = sshll.u32 %s346, 4
          %s359 = int_to_ptr.vmem [resolvable:$true] %s358
          %361 = dma.vmem_to_hbm [thread:$0]  %s359, 64, %s356, %s343
        $region56: #{tpu_custom_call.1} parent=31 // pred_fallthru
          _
      $region32: #{tpu_custom_call.1} parent=5 // pred_fallthru
        _
      %p362 = scmp.le.s32.totalorder 2, %s15
      // Predicated region
      $region57: #{tpu_custom_call.1} parent=5 // pred_check
        %p363 = pneg %p362
      $region58: #{tpu_custom_call.1} parent=5 // pred_check_branch
        %365 = sbr.rel (%p363) target = $region60
      $region59: #{tpu_custom_call.1} parent=5 // pred_region
        %s366 = ssub.s32 %s15, 2
        // Predicated region
        $region61: #{tpu_custom_call.1} parent=59 // pred_check
          %p367 = pneg %p151
        $region62: #{tpu_custom_call.1} parent=59 // pred_check_branch
          %369 = sbr.rel (%p367) target = $region64
        $region63: #{tpu_custom_call.1} parent=59 // pred_region
          %s370 = sand.u32 %s136, 1
          %s371 = scalar_lea.sflag [#allocation7], %s370
          %s372 = sand.u32 %s136, 1
          %s373 = smul.addr %s372, 4
          %s374 = scalar_lea.vmem [#allocation8], %s373
          %375 = dma.done %s371, 64
        $region64: #{tpu_custom_call.1} parent=59 // pred_fallthru
          _
      $region60: #{tpu_custom_call.1} parent=5 // pred_fallthru
        _
    $region6: #{tpu_custom_call.1} parent=1 // loop_footer
      %s19 = sadd.s32 1, %s15
    $region7: #{tpu_custom_call.1} parent=1 // loop_footer_branch
      %14 = sbr.rel target = $region3
    $region8: #{tpu_custom_call.1} parent=1 // loop_exit
      _
    %376 = vsyncpa [#allocation6], 1
    %s377 = scalar_lea.sflag [#allocation6], 1
    %378 = vsyncpa %s377, 1
    %379 = vsyncpa [#allocation7], 1
    %s380 = scalar_lea.sflag [#allocation7], 1
    %381 = vsyncpa %s380, 1

</llo_original>
